<compile_context>
chip_gen: v5e
topology: v5e:2x2
jax: 0.10.0
libtpu: 0.0.40
codegen_flags: <defaults>
</compile_context>

<pallas_src>
import functools

import jax
import jax.numpy as jnp
from jax.experimental import pallas as pl
from jax.experimental.pallas import tpu as pltpu

LANE = 128
SUBLANE = 8


def _vmem_capacity_bytes():
    """Physical VMEM per TensorCore; conservative fallback if unavailable."""
    try:
        return int(pltpu.get_tpu_info().vmem_capacity_bytes)
    except Exception:
        return 64 << 20  # v7x per-TC VMEM (smallest of v5e/v6e/v7x)


def _dice_partial_sums_kernel(x_ref, t_ref, inter_ref, s1_ref, s2_ref, *,
                              d, rows_per_block, fold_rows, needs_mask):
    """Accumulate lane-dense partial sums of sigmoid(x)*t, sigmoid(x), t.

    x_ref/t_ref: (rows_per_block, 128) block of one sample's flattened features.
    inter/s1/s2: (fold_rows, 128) accumulators, resident across the reduction
                 (trailing) grid axis for a fixed sample.
    """
    k = pl.program_id(1)

    @pl.when(k == 0)
    def _():
        inter_ref[...] = jnp.zeros_like(inter_ref)
        s1_ref[...] = jnp.zeros_like(s1_ref)
        s2_ref[...] = jnp.zeros_like(s2_ref)

    # Inputs may be bf16 / int; upcast in-kernel (keeps HBM traffic narrow).
    p = jax.nn.sigmoid(x_ref[...].astype(jnp.float32))  # (rows, 128)
    t = t_ref[...].astype(jnp.float32)

    if needs_mask:
        # Mask columns beyond the true feature length d (covers both the
        # 128-padding tail and a partial trailing row-block).
        row = jax.lax.broadcasted_iota(jnp.int32, p.shape, 0)
        col = jax.lax.broadcasted_iota(jnp.int32, p.shape, 1)
        flat = (k * rows_per_block + row) * LANE + col
        valid = flat < d
        p = jnp.where(valid, p, 0.0)
        t = jnp.where(valid, t, 0.0)

    def fold(v):
        # (rows, 128) -> (fold_rows, 128): pure vreg adds when fold_rows == 8.
        if fold_rows == 1:
            return jnp.sum(v, axis=0, keepdims=True)
        return jnp.sum(v.reshape(rows_per_block // fold_rows, fold_rows, LANE),
                       axis=0)

    inter_ref[...] += fold(p * t)
    s1_ref[...] += fold(p)
    s2_ref[...] += fold(t)


@functools.partial(jax.jit, static_argnames=("block_rows",))
def soft_dice_loss(logits, targets, block_rows=None):
    """Matches SoftDiceLoss.forward(logits, targets) from the PyTorch module.

    Inputs may be supplied narrow (e.g. bf16 logits, int8/bool targets); they
    are upcast to f32 inside the kernel only.
    """
    num = logits.shape[0]
    smooth = 1.0

    # Flatten NCHW -> (N, D), row-major (same as .view(num, -1)).
    x = logits.reshape(num, -1)
    t = targets.reshape(num, -1)
    d = x.shape[1]

    # Sublane-dense view: (N, D) -> (N, R, 128). Free when D % 128 == 0.
    d_pad = pl.cdiv(d, LANE) * LANE
    if d_pad != d:
        # TODO(synk): rare path (D not a multiple of 128) — a flat 2-D kernel
        # variant could avoid this copy entirely; pad values are masked anyway.
        x = jnp.pad(x, ((0, 0), (0, d_pad - d)))
        t = jnp.pad(t, ((0, 0), (0, d_pad - d)))
    r_total = d_pad // LANE
    x = x.reshape(num, r_total, LANE)
    t = t.reshape(num, r_total, LANE)

    # ---- VMEM-budgeted block size (generation aware) ----
    vmem_cap = _vmem_capacity_bytes()
    in_bytes_per_row = LANE * (x.dtype.itemsize + t.dtype.itemsize)
    if block_rows is None:
        budget = vmem_cap // 4  # double-buffered input blocks <= 1/4 of VMEM
        rows = max(SUBLANE, (budget // (2 * in_bytes_per_row)) // SUBLANE * SUBLANE)
    else:
        rows = block_rows
    if r_total <= rows:
        rows = r_total  # whole row axis in one block (always a legal block)

    nblk = pl.cdiv(r_total, rows)
    fold_rows = SUBLANE if rows % SUBLANE == 0 else 1
    needs_mask = (d != d_pad) or (r_total % rows != 0)

    kernel = functools.partial(
        _dice_partial_sums_kernel,
        d=d, rows_per_block=rows, fold_rows=fold_rows, needs_mask=needs_mask)

    # Give the compiler the budget the pipeline actually needs (with headroom),
    # but never more than ~3/4 of physical VMEM (keeps v7x's 64 MiB safe).
    pipeline_bytes = 2 * rows * in_bytes_per_row  # 2 pipeline buffers, 2 inputs
    vmem_limit = int(min(vmem_cap * 3 // 4,
                         max(32 << 20, pipeline_bytes + (8 << 20))))

    out_struct = jax.ShapeDtypeStruct((num, fold_rows, LANE), jnp.float32)
    acc_spec = pl.BlockSpec((None, fold_rows, LANE), lambda n, k: (n, 0, 0))

    inter, s1, s2 = pl.pallas_call(
        kernel,
        out_shape=(out_struct, out_struct, out_struct),
        grid_spec=pltpu.PrefetchScalarGridSpec(
            num_scalar_prefetch=0,
            grid=(num, nblk),
            in_specs=[
                pl.BlockSpec((None, rows, LANE), lambda n, k: (n, k, 0)),
                pl.BlockSpec((None, rows, LANE), lambda n, k: (n, k, 0)),
            ],
            out_specs=[acc_spec, acc_spec, acc_spec],
        ),
        compiler_params=pltpu.CompilerParams(
            dimension_semantics=("parallel", "arbitrary"),
            vmem_limit_bytes=vmem_limit,
        ),
    )(x, t)

    # Tiny finalize (num x 8 x 128 values) — plain JAX glue.
    inter = jnp.sum(inter, axis=(1, 2))
    s1 = jnp.sum(s1, axis=(1, 2))
    s2 = jnp.sum(s2, axis=(1, 2))

    score = 2.0 * (inter + smooth) / (s1 + s2 + smooth)
    return (1.0 - jnp.sum(score) / num).astype(jnp.float32)


def _reference(logits, targets):
    num = logits.shape[0]
    smooth = 1.0
    probs = jax.nn.sigmoid(logits).reshape(num, -1)
    m2 = targets.reshape(num, -1)
    inter = jnp.sum(probs * m2, axis=1)
    score = 2.0 * (inter + smooth) / (jnp.sum(probs, axis=1) + jnp.sum(m2, axis=1) + smooth)
    return 1.0 - jnp.sum(score) / num


if __name__ == "__main__":
    key = jax.random.PRNGKey(0)
    k1, k2 = jax.random.split(key)

    # Small NCHW shapes consistent with a segmentation-style loss.
    logits = jax.random.normal(k1, (2, 4, 16, 16), dtype=jnp.float32)
    targets = (jax.random.uniform(k2, (2, 4, 16, 16)) > 0.5).astype(jnp.float32)

    out = soft_dice_loss(logits, targets)
    out = jax.block_until_ready(out)

    ref = _reference(logits, targets)
    assert jnp.allclose(out, ref, rtol=1e-5, atol=1e-5), (out, ref)

    print("KERNEL_OK")
</pallas_src>

<mosaic_0001>
module attributes {stable_mosaic.version = 11 : i64} {
  func.func @_dice_partial_sums_kernel(%arg0: i32, %arg1: i32, %arg2: memref<1x8x128xf32, #tpu.memory_space<vmem>>, %arg3: memref<1x8x128xf32, #tpu.memory_space<vmem>>, %arg4: memref<1x8x128xf32, #tpu.memory_space<vmem>>, %arg5: memref<1x8x128xf32, #tpu.memory_space<vmem>>, %arg6: memref<1x8x128xf32, #tpu.memory_space<vmem>>) attributes {dimension_semantics = [#tpu.dimension_semantics<parallel>, #tpu.dimension_semantics<arbitrary>], iteration_bounds = array<i64: 2, 1>, scalar_prefetch = 0 : i64, scratch_operands = 0 : i64, tpu.core_type = #tpu.core_type<tc>, window_params = [{transform_indices = @transform_0, window_bounds = array<i64: 1, 8, 128>}, {transform_indices = @transform_1, window_bounds = array<i64: 1, 8, 128>}, {transform_indices = @transform_2, window_bounds = array<i64: 1, 8, 128>}, {transform_indices = @transform_3, window_bounds = array<i64: 1, 8, 128>}, {transform_indices = @transform_4, window_bounds = array<i64: 1, 8, 128>}]} {
    %c0_i32 = arith.constant 0 : i32
    %0 = arith.cmpi eq, %arg1, %c0_i32 : i32
    %1 = arith.extui %0 : i1 to i32
    %c0_i32_0 = arith.constant 0 : i32
    %2 = arith.cmpi ne, %1, %c0_i32_0 : i32
    scf.if %2 {
      %cst_27 = arith.constant 0.000000e+00 : f32
      %37 = vector.broadcast %cst_27 : f32 to vector<8x128xf32>
      %c0_28 = arith.constant 0 : index
      %c0_29 = arith.constant 0 : index
      %c0_30 = arith.constant 0 : index
      %38 = vector.load %arg4[%c0_28, %c0_29, %c0_30] : memref<1x8x128xf32, #tpu.memory_space<vmem>>, vector<1x8x128xf32>
      %39 = vector.shape_cast %38 : vector<1x8x128xf32> to vector<8x128xf32>
      %40 = vector.shape_cast %37 : vector<8x128xf32> to vector<1x8x128xf32>
      tpu.vector_store %arg4[%c0_28, %c0_29, %c0_30], %40 {strides = array<i32>} : memref<1x8x128xf32, #tpu.memory_space<vmem>>, vector<1x8x128xf32>,
      %cst_31 = arith.constant 0.000000e+00 : f32
      %41 = vector.broadcast %cst_31 : f32 to vector<8x128xf32>
      %c0_32 = arith.constant 0 : index
      %c0_33 = arith.constant 0 : index
      %c0_34 = arith.constant 0 : index
      %42 = vector.load %arg5[%c0_32, %c0_33, %c0_34] : memref<1x8x128xf32, #tpu.memory_space<vmem>>, vector<1x8x128xf32>
      %43 = vector.shape_cast %42 : vector<1x8x128xf32> to vector<8x128xf32>
      %44 = vector.shape_cast %41 : vector<8x128xf32> to vector<1x8x128xf32>
      tpu.vector_store %arg5[%c0_32, %c0_33, %c0_34], %44 {strides = array<i32>} : memref<1x8x128xf32, #tpu.memory_space<vmem>>, vector<1x8x128xf32>,
      %cst_35 = arith.constant 0.000000e+00 : f32
      %45 = vector.broadcast %cst_35 : f32 to vector<8x128xf32>
      %c0_36 = arith.constant 0 : index
      %c0_37 = arith.constant 0 : index
      %c0_38 = arith.constant 0 : index
      %46 = vector.load %arg6[%c0_36, %c0_37, %c0_38] : memref<1x8x128xf32, #tpu.memory_space<vmem>>, vector<1x8x128xf32>
      %47 = vector.shape_cast %46 : vector<1x8x128xf32> to vector<8x128xf32>
      %48 = vector.shape_cast %45 : vector<8x128xf32> to vector<1x8x128xf32>
      tpu.vector_store %arg6[%c0_36, %c0_37, %c0_38], %48 {strides = array<i32>} : memref<1x8x128xf32, #tpu.memory_space<vmem>>, vector<1x8x128xf32>,
    } else {
    }
    %c0 = arith.constant 0 : index
    %c0_1 = arith.constant 0 : index
    %c0_2 = arith.constant 0 : index
    %3 = vector.load %arg2[%c0, %c0_1, %c0_2] : memref<1x8x128xf32, #tpu.memory_space<vmem>>, vector<1x8x128xf32>
    %4 = vector.shape_cast %3 : vector<1x8x128xf32> to vector<8x128xf32>
    %5 = arith.negf %4 : vector<8x128xf32>
    %6 = math.exp %5 : vector<8x128xf32>
    %cst = arith.constant 1.000000e+00 : f32
    %7 = vector.broadcast %cst : f32 to vector<8x128xf32>
    %8 = arith.addf %7, %6 : vector<8x128xf32>
    %9 = arith.divf %7, %8 : vector<8x128xf32>
    %c0_3 = arith.constant 0 : index
    %c0_4 = arith.constant 0 : index
    %c0_5 = arith.constant 0 : index
    %10 = vector.load %arg3[%c0_3, %c0_4, %c0_5] : memref<1x8x128xf32, #tpu.memory_space<vmem>>, vector<1x8x128xf32>
    %11 = vector.shape_cast %10 : vector<1x8x128xf32> to vector<8x128xf32>
    %c0_6 = arith.constant 0 : index
    %c0_7 = arith.constant 0 : index
    %c0_8 = arith.constant 0 : index
    %12 = vector.load %arg4[%c0_6, %c0_7, %c0_8] : memref<1x8x128xf32, #tpu.memory_space<vmem>>, vector<1x8x128xf32>
    %13 = vector.shape_cast %12 : vector<1x8x128xf32> to vector<8x128xf32>
    %14 = arith.mulf %9, %11 : vector<8x128xf32>
    %15 = vector.shape_cast %14 : vector<8x128xf32> to vector<1x8x128xf32>
    %cst_9 = arith.constant dense<0.000000e+00> : vector<8x128xf32>
    %16 = vector.multi_reduction <add>, %15, %cst_9 [0] : vector<1x8x128xf32> to vector<8x128xf32>
    %17 = arith.addf %13, %16 : vector<8x128xf32>
    %c0_10 = arith.constant 0 : index
    %c0_11 = arith.constant 0 : index
    %c0_12 = arith.constant 0 : index
    %18 = vector.load %arg4[%c0_10, %c0_11, %c0_12] : memref<1x8x128xf32, #tpu.memory_space<vmem>>, vector<1x8x128xf32>
    %19 = vector.shape_cast %18 : vector<1x8x128xf32> to vector<8x128xf32>
    %20 = vector.shape_cast %17 : vector<8x128xf32> to vector<1x8x128xf32>
    tpu.vector_store %arg4[%c0_10, %c0_11, %c0_12], %20 {strides = array<i32>} : memref<1x8x128xf32, #tpu.memory_space<vmem>>, vector<1x8x128xf32>,
    %c0_13 = arith.constant 0 : index
    %c0_14 = arith.constant 0 : index
    %c0_15 = arith.constant 0 : index
    %21 = vector.load %arg5[%c0_13, %c0_14, %c0_15] : memref<1x8x128xf32, #tpu.memory_space<vmem>>, vector<1x8x128xf32>
    %22 = vector.shape_cast %21 : vector<1x8x128xf32> to vector<8x128xf32>
    %23 = vector.shape_cast %9 : vector<8x128xf32> to vector<1x8x128xf32>
    %cst_16 = arith.constant dense<0.000000e+00> : vector<8x128xf32>
    %24 = vector.multi_reduction <add>, %23, %cst_16 [0] : vector<1x8x128xf32> to vector<8x128xf32>
    %25 = arith.addf %22, %24 : vector<8x128xf32>
    %c0_17 = arith.constant 0 : index
    %c0_18 = arith.constant 0 : index
    %c0_19 = arith.constant 0 : index
    %26 = vector.load %arg5[%c0_17, %c0_18, %c0_19] : memref<1x8x128xf32, #tpu.memory_space<vmem>>, vector<1x8x128xf32>
    %27 = vector.shape_cast %26 : vector<1x8x128xf32> to vector<8x128xf32>
    %28 = vector.shape_cast %25 : vector<8x128xf32> to vector<1x8x128xf32>
    tpu.vector_store %arg5[%c0_17, %c0_18, %c0_19], %28 {strides = array<i32>} : memref<1x8x128xf32, #tpu.memory_space<vmem>>, vector<1x8x128xf32>,
    %c0_20 = arith.constant 0 : index
    %c0_21 = arith.constant 0 : index
    %c0_22 = arith.constant 0 : index
    %29 = vector.load %arg6[%c0_20, %c0_21, %c0_22] : memref<1x8x128xf32, #tpu.memory_space<vmem>>, vector<1x8x128xf32>
    %30 = vector.shape_cast %29 : vector<1x8x128xf32> to vector<8x128xf32>
    %31 = vector.shape_cast %11 : vector<8x128xf32> to vector<1x8x128xf32>
    %cst_23 = arith.constant dense<0.000000e+00> : vector<8x128xf32>
    %32 = vector.multi_reduction <add>, %31, %cst_23 [0] : vector<1x8x128xf32> to vector<8x128xf32>
    %33 = arith.addf %30, %32 : vector<8x128xf32>
    %c0_24 = arith.constant 0 : index
    %c0_25 = arith.constant 0 : index
    %c0_26 = arith.constant 0 : index
    %34 = vector.load %arg6[%c0_24, %c0_25, %c0_26] : memref<1x8x128xf32, #tpu.memory_space<vmem>>, vector<1x8x128xf32>
    %35 = vector.shape_cast %34 : vector<1x8x128xf32> to vector<8x128xf32>
    %36 = vector.shape_cast %33 : vector<8x128xf32> to vector<1x8x128xf32>
    tpu.vector_store %arg6[%c0_24, %c0_25, %c0_26], %36 {strides = array<i32>} : memref<1x8x128xf32, #tpu.memory_space<vmem>>, vector<1x8x128xf32>,
    return
  }
  func.func @transform_0(%arg0: i32, %arg1: i32) -> (i32, i32, i32) {
    %c0_i32 = arith.constant 0 : i32
    %c0_i32_0 = arith.constant 0 : i32
    return %arg0, %arg1, %c0_i32 : i32, i32, i32
  }
  func.func @transform_1(%arg0: i32, %arg1: i32) -> (i32, i32, i32) {
    %c0_i32 = arith.constant 0 : i32
    %c0_i32_0 = arith.constant 0 : i32
    return %arg0, %arg1, %c0_i32 : i32, i32, i32
  }
  func.func @transform_2(%arg0: i32, %arg1: i32) -> (i32, i32, i32) {
    %c0_i32 = arith.constant 0 : i32
    %c0_i32_0 = arith.constant 0 : i32
    %c0_i32_1 = arith.constant 0 : i32
    return %arg0, %c0_i32, %c0_i32_0 : i32, i32, i32
  }
  func.func @transform_3(%arg0: i32, %arg1: i32) -> (i32, i32, i32) {
    %c0_i32 = arith.constant 0 : i32
    %c0_i32_0 = arith.constant 0 : i32
    %c0_i32_1 = arith.constant 0 : i32
    return %arg0, %c0_i32, %c0_i32_0 : i32, i32, i32
  }
  func.func @transform_4(%arg0: i32, %arg1: i32) -> (i32, i32, i32) {
    %c0_i32 = arith.constant 0 : i32
    %c0_i32_0 = arith.constant 0 : i32
    %c0_i32_1 = arith.constant 0 : i32
    return %arg0, %c0_i32, %c0_i32_0 : i32, i32, i32
  }
}

</mosaic_0001>

<llo_original>
// kernel: soft_dice_loss.1
$region0: #{soft_dice_loss.1}
  #allocation0 [shape = 'u32[]', space=smem, size = 0x4, offset = 0x4, fixed_abs, tag = 'smem constant byte address 0x4 - core index']
  #allocation1 [shape = 'u32[72,128]{1,0:T(1,128)}', space=vmem, size = 0x9000, scoped, tag = 'internal scratch']
  %s0 = inlined_call_operand.vmem [shape: f32[2,8,128], index: 0, kind: input, shape index: {}]
  %s1 = inlined_call_operand.vmem [shape: f32[2,8,128], index: 1, kind: input, shape index: {}]
  %s2 = inlined_call_operand.vmem [shape: f32[2,8,128], index: 2, kind: output, shape index: {0}]
  %s3 = inlined_call_operand.vmem [shape: f32[2,8,128], index: 3, kind: output, shape index: {1}]
  %s4 = inlined_call_operand.vmem [shape: f32[2,8,128], index: 4, kind: output, shape index: {2}]
  %5 = xla_tuple %s2, %s3, %s4
  %s6 = sld [smem:[#allocation0]]
  $region61: #{soft_dice_loss.1} parent=0
    _
  %s8 = ssub.s32 1, %s6
  %s9 = scalar_select 0, %s8, %s6
  loop: start=0, step=1, limit=4
  $region2: #{soft_dice_loss.1} parent=0 // loop_pre_header
    _
  $region3: #{soft_dice_loss.1} parent=0 // loop_header
    %s11 = sphi 0, %s15
    %p12 = scmp.ge.s32.totalorder %s11, 4
    %s18 = sphi 0, %s30
    %s19 = sphi 0, %s26
    %s20 = sphi 0, %s18
    %s21 = sphi 0, %s19
    %s22 = sphi 0, %s20
    %s23 = sphi 0, %s21
    %s35 = sphi 0, %s37
    %s38 = sphi 0, %s35
    %s39 = sphi 0, %s38
    %s55 = sphi 0, %s39
    %s63 = sphi 0, %s65
    %s66 = sphi 0, %s63
    %s67 = sphi 0, %s66
    %s83 = sphi 0, %s67
    %s89 = sphi 0, %s91
    %s92 = sphi 0, %s89
    %s93 = sphi 0, %s92
    %s109 = sphi 0, %s93
    %s115 = sphi 0, %s117
    %s118 = sphi 0, %s115
    %s119 = sphi 0, %s118
    %s135 = sphi 0, %s119
    %s141 = sphi 0, %s143
    %s144 = sphi 0, %s141
    %s145 = sphi 0, %s144
    %s161 = sphi 0, %s145
  $region4: #{soft_dice_loss.1} parent=0 // loop_header_branch
    %14 = sbr.rel (%p12) target = $region8
  $region5: #{soft_dice_loss.1} parent=0 // loop_body
    %s16 = ssub.s32 %s11, 1
    %s17 = ssub.s32 %s11, 2
    %s24 = sadd.s32 1, %s19
    %p25 = scmp.ge.s32.totalorder %s24, 1
    %s26 = scalar_select %p25, 0, %s24
    %s27 = sadd.s32 1, %s18
    %s28 = scalar_select %p25, %s27, %s18
    %p29 = scmp.ge.s32.totalorder %s28, 2
    %s30 = scalar_select %p29, 0, %s28
    %s31 = ssub.s32 %s18, %s30
    %s32 = ssub.s32 %s19, %s26
    %s33 = sor.u32 %s31, %s32
    %p34 = scmp.eq.s32.totalorder %s33, 0
    %s36 = sadd.s32 %s35, 1
    %s37 = scalar_select %p34, %s35, %s36
    %p40 = pneg %p34
    %p41 = scmp.eq.s32.totalorder %s11, 1
    %p42 = por %p40, %p41
    %p43 = scmp.ne.s32.totalorder %s35, %s38
    %p44 = scmp.eq.s32.totalorder %s11, 0
    %p45 = por %p43, %p44
    %p46 = scmp.ne.s32.totalorder %s35, %s38
    %p47 = scmp.eq.s32.totalorder %s16, 1
    %p48 = por %p46, %p47
    %p49 = scmp.ne.s32.totalorder %s38, %s39
    %p50 = scmp.eq.s32.totalorder %s16, 0
    %p51 = por %p49, %p50
    %p52 = scmp.ne.s32.totalorder %s38, %s39
    %p53 = scmp.eq.s32.totalorder %s17, 1
    %p54 = por %p52, %p53
    %p56 = scmp.ne.s32.totalorder %s39, %s55
    %p57 = scmp.eq.s32.totalorder %s17, 0
    %p58 = por %p56, %p57
    %s59 = ssub.s32 %s18, %s30
    %s60 = ssub.s32 %s19, %s26
    %s61 = sor.u32 %s59, %s60
    %p62 = scmp.eq.s32.totalorder %s61, 0
    %s64 = sadd.s32 %s63, 1
    %s65 = scalar_select %p62, %s63, %s64
    %p68 = pneg %p62
    %p69 = scmp.eq.s32.totalorder %s11, 1
    %p70 = por %p68, %p69
    %p71 = scmp.ne.s32.totalorder %s63, %s66
    %p72 = scmp.eq.s32.totalorder %s11, 0
    %p73 = por %p71, %p72
    %p74 = scmp.ne.s32.totalorder %s63, %s66
    %p75 = scmp.eq.s32.totalorder %s16, 1
    %p76 = por %p74, %p75
    %p77 = scmp.ne.s32.totalorder %s66, %s67
    %p78 = scmp.eq.s32.totalorder %s16, 0
    %p79 = por %p77, %p78
    %p80 = scmp.ne.s32.totalorder %s66, %s67
    %p81 = scmp.eq.s32.totalorder %s17, 1
    %p82 = por %p80, %p81
    %p84 = scmp.ne.s32.totalorder %s67, %s83
    %p85 = scmp.eq.s32.totalorder %s17, 0
    %p86 = por %p84, %p85
    %s87 = ssub.s32 %s18, %s30
    %p88 = scmp.eq.s32.totalorder %s87, 0
    %s90 = sadd.s32 %s89, 1
    %s91 = scalar_select %p88, %s89, %s90
    %p94 = pneg %p88
    %p95 = scmp.eq.s32.totalorder %s11, 1
    %p96 = por %p94, %p95
    %p97 = scmp.ne.s32.totalorder %s89, %s92
    %p98 = scmp.eq.s32.totalorder %s11, 0
    %p99 = por %p97, %p98
    %p100 = scmp.ne.s32.totalorder %s89, %s92
    %p101 = scmp.eq.s32.totalorder %s16, 1
    %p102 = por %p100, %p101
    %p103 = scmp.ne.s32.totalorder %s92, %s93
    %p104 = scmp.eq.s32.totalorder %s16, 0
    %p105 = por %p103, %p104
    %p106 = scmp.ne.s32.totalorder %s92, %s93
    %p107 = scmp.eq.s32.totalorder %s17, 1
    %p108 = por %p106, %p107
    %p110 = scmp.ne.s32.totalorder %s93, %s109
    %p111 = scmp.eq.s32.totalorder %s17, 0
    %p112 = por %p110, %p111
    %s113 = ssub.s32 %s18, %s30
    %p114 = scmp.eq.s32.totalorder %s113, 0
    %s116 = sadd.s32 %s115, 1
    %s117 = scalar_select %p114, %s115, %s116
    %p120 = pneg %p114
    %p121 = scmp.eq.s32.totalorder %s11, 1
    %p122 = por %p120, %p121
    %p123 = scmp.ne.s32.totalorder %s115, %s118
    %p124 = scmp.eq.s32.totalorder %s11, 0
    %p125 = por %p123, %p124
    %p126 = scmp.ne.s32.totalorder %s115, %s118
    %p127 = scmp.eq.s32.totalorder %s16, 1
    %p128 = por %p126, %p127
    %p129 = scmp.ne.s32.totalorder %s118, %s119
    %p130 = scmp.eq.s32.totalorder %s16, 0
    %p131 = por %p129, %p130
    %p132 = scmp.ne.s32.totalorder %s118, %s119
    %p133 = scmp.eq.s32.totalorder %s17, 1
    %p134 = por %p132, %p133
    %p136 = scmp.ne.s32.totalorder %s119, %s135
    %p137 = scmp.eq.s32.totalorder %s17, 0
    %p138 = por %p136, %p137
    %s139 = ssub.s32 %s18, %s30
    %p140 = scmp.eq.s32.totalorder %s139, 0
    %s142 = sadd.s32 %s141, 1
    %s143 = scalar_select %p140, %s141, %s142
    %p146 = pneg %p140
    %p147 = scmp.eq.s32.totalorder %s11, 1
    %p148 = por %p146, %p147
    %p149 = scmp.ne.s32.totalorder %s141, %s144
    %p150 = scmp.eq.s32.totalorder %s11, 0
    %p151 = por %p149, %p150
    %p152 = scmp.ne.s32.totalorder %s141, %s144
    %p153 = scmp.eq.s32.totalorder %s16, 1
    %p154 = por %p152, %p153
    %p155 = scmp.ne.s32.totalorder %s144, %s145
    %p156 = scmp.eq.s32.totalorder %s16, 0
    %p157 = por %p155, %p156
    %p158 = scmp.ne.s32.totalorder %s144, %s145
    %p159 = scmp.eq.s32.totalorder %s17, 1
    %p160 = por %p158, %p159
    %p162 = scmp.ne.s32.totalorder %s145, %s161
    %p163 = scmp.eq.s32.totalorder %s17, 0
    %p164 = por %p162, %p163
    %p165 = scmp.le.s32.totalorder 1, %s11
    %p166 = scmp.lt.s32.totalorder %s11, 3
    %p167 = pnand %p165, %p166
    %p168 = pneg %p167
    // Predicated region
    $region9: #{soft_dice_loss.1} parent=5 // pred_check
      _
    $region10: #{soft_dice_loss.1} parent=5 // pred_check_branch
      %170 = sbr.rel (%p167) target = $region12
    $region11: #{soft_dice_loss.1} parent=5 // pred_region
      %s171 = ssub.s32 %s11, 1
    $region12: #{soft_dice_loss.1} parent=5 // pred_fallthru
      _
    %p172 = scmp.lt.s32.totalorder %s11, 2
    // Predicated region
    $region13: #{soft_dice_loss.1} parent=5 // pred_check
      %p173 = pneg %p172
    $region14: #{soft_dice_loss.1} parent=5 // pred_check_branch
      %175 = sbr.rel (%p173) target = $region16
    $region15: #{soft_dice_loss.1} parent=5 // pred_region
      // Predicated region
      $region17: #{soft_dice_loss.1} parent=15 // pred_check
        %p176 = pneg %p45
      $region18: #{soft_dice_loss.1} parent=15 // pred_check_branch
        %178 = sbr.rel (%p176) target = $region20
      $region19: #{soft_dice_loss.1} parent=15 // pred_region
        %p179 = scmp.lt.s32.totalorder %s18, 1
        %s180 = scalar_select %p179, %s18, 1
        %p181 = scmp.lt.s32.totalorder %s19, 0
        %s182 = scalar_select %p181, %s19, 0
        %s183 = sadd.s32 %s182, %s180
        %s184 = smul.addr %s183, 8
        %s185 = scalar_lea.vmem %s0, %s184
      $region20: #{soft_dice_loss.1} parent=15 // pred_fallthru
        _
      // Predicated region
      $region21: #{soft_dice_loss.1} parent=15 // pred_check
        %p186 = pneg %p73
      $region22: #{soft_dice_loss.1} parent=15 // pred_check_branch
        %188 = sbr.rel (%p186) target = $region24
      $region23: #{soft_dice_loss.1} parent=15 // pred_region
        %p189 = scmp.lt.s32.totalorder %s18, 1
        %s190 = scalar_select %p189, %s18, 1
        %p191 = scmp.lt.s32.totalorder %s19, 0
        %s192 = scalar_select %p191, %s19, 0
        %s193 = sadd.s32 %s192, %s190
        %s194 = smul.addr %s193, 8
        %s195 = scalar_lea.vmem %s1, %s194
      $region24: #{soft_dice_loss.1} parent=15 // pred_fallthru
        _
    $region16: #{soft_dice_loss.1} parent=5 // pred_fallthru
      _
    %p196 = scmp.le.s32.totalorder 1, %s11
    %p197 = scmp.lt.s32.totalorder %s11, 3
    %p198 = pnand %p196, %p197
    %p199 = pneg %p198
    // Predicated region
    $region25: #{soft_dice_loss.1} parent=5 // pred_check
      _
    $region26: #{soft_dice_loss.1} parent=5 // pred_check_branch
      %201 = sbr.rel (%p198) target = $region28
    $region27: #{soft_dice_loss.1} parent=5 // pred_region
      %s202 = ssub.s32 %s11, 1
      %p203 = scmp.lt.s32.totalorder %s20, 1
      %s204 = scalar_select %p203, %s20, 1
      %p205 = scmp.lt.s32.totalorder %s21, 0
      %s206 = scalar_select %p205, %s21, 0
      %s207 = sadd.s32 %s206, %s204
      %s208 = smul.addr %s207, 8
      %s209 = scalar_lea.vmem %s0, %s208
      %p210 = pneg %p51
      %p211 = pneg %p48
      %p212 = scmp.lt.s32.totalorder %s20, 1
      %s213 = scalar_select %p212, %s20, 1
      %p214 = scmp.lt.s32.totalorder %s21, 0
      %s215 = scalar_select %p214, %s21, 0
      %s216 = sadd.s32 %s215, %s213
      %s217 = smul.addr %s216, 8
      %s218 = scalar_lea.vmem %s1, %s217
      %p219 = pneg %p79
      %p220 = pneg %p76
      %p221 = pneg %p105
      %p222 = pneg %p102
      %p223 = scmp.lt.s32.totalorder %s20, 1
      %s224 = scalar_select %p223, %s20, 1
      %s225 = smul.addr %s224, 8
      %s226 = scalar_lea.vmem %s2, %s225
      %p227 = pneg %p131
      %p228 = pneg %p128
      %p229 = scmp.lt.s32.totalorder %s20, 1
      %s230 = scalar_select %p229, %s20, 1
      %s231 = smul.addr %s230, 8
      %s232 = scalar_lea.vmem %s3, %s231
      %p233 = pneg %p157
      %p234 = pneg %p154
      %p235 = scmp.lt.s32.totalorder %s20, 1
      %s236 = scalar_select %p235, %s20, 1
      %s237 = smul.addr %s236, 8
      %s238 = scalar_lea.vmem %s4, %s237
      %p239 = scmp.lt.s32.totalorder %s20, 1
      %s240 = scalar_select %p239, %s20, 1
      %p241 = scmp.lt.s32.totalorder %s21, 0
      %s242 = scalar_select %p241, %s21, 0
      %s243 = sadd.s32 %s242, %s240
      %s244 = smul.addr %s243, 8
      %s245 = scalar_lea.vmem %s0, %s244
      %p246 = scmp.lt.s32.totalorder %s20, 1
      %s247 = scalar_select %p246, %s20, 1
      %p248 = scmp.lt.s32.totalorder %s21, 0
      %s249 = scalar_select %p248, %s21, 0
      %s250 = sadd.s32 %s249, %s247
      %s251 = smul.addr %s250, 8
      %s252 = scalar_lea.vmem %s1, %s251
      %p253 = scmp.lt.s32.totalorder %s20, 1
      %s254 = scalar_select %p253, %s20, 1
      %s255 = smul.addr %s254, 8
      %s256 = scalar_lea.vmem %s2, %s255
      %p257 = scmp.lt.s32.totalorder %s20, 1
      %s258 = scalar_select %p257, %s20, 1
      %s259 = smul.addr %s258, 8
      %s260 = scalar_lea.vmem %s3, %s259
      %p261 = scmp.lt.s32.totalorder %s20, 1
      %s262 = scalar_select %p261, %s20, 1
      %s263 = smul.addr %s262, 8
      %s264 = scalar_lea.vmem %s4, %s263
      %p265 = scmp.eq.s32.totalorder %s21, 0
      // Predicated region
      $region29: #{soft_dice_loss.1} parent=27 // pred_check
        %p266 = pneg %p265
      $region30: #{soft_dice_loss.1} parent=27 // pred_check_branch
        %268 = sbr.rel (%p266) target = $region32
      $region31: #{soft_dice_loss.1} parent=27 // pred_region
        %269 = vst [vmem:[%s256] sm:$0xff] 0.0
        %270 = vst [vmem:[%s260] sm:$0xff] 0.0
        %271 = vst [vmem:[%s264] sm:$0xff] 0.0
      $region32: #{soft_dice_loss.1} parent=27 // pred_fallthru
        _
      %v272 = vld [vmem:[%s245] sm:$0xff]
      %v273 = vxor.u32 %v272, 2147483648
      %v274 = vmul.f32 %v273, 1.442695
      %v275 = vpow.pop %v274
      %v276 = vadd.f32 %v275, 1.0
      %v277 = vrcp.pop %v276
      %v278 = vmul.f32 %v276, %v277
      %v279 = vsub.f32 1.0, %v278
      %v280 = vmul.f32 %v277, %v279
      %v281 = vadd.f32 %v277, %v280
      %vm282 = vweird.f32 %v276
      %vm283 = vweird.f32 %v277
      %vm284 = vmor %vm282, %vm283
      %v285 = vsel %vm284, %v277, %v281
      %v286 = vand.u32 2147483647, %v276
      %vm287 = vcmp.eq.f32.partialorder %v286, 8.507059e+37
      %v288 = vand.u32 %v276, 2147483648
      %v289 = vor.u32 1.1754944e-38, %v288
      %v290 = vsel %vm287, %v289, %v285
      %v291 = vmul.f32 1.0, %v290
      %v292 = vld [vmem:[%s252] sm:$0xff]
      %v293 = vld [vmem:[%s256] sm:$0xff]
      %v294 = vmul.f32 %v291, %v292
      %v295 = vadd.f32 %v294, 0.0
      %v296 = vadd.f32 %v293, %v295
      %297 = vst [vmem:[%s256] sm:$0xff] %v296
      %v298 = vld [vmem:[%s260] sm:$0xff]
      %v299 = vadd.f32 %v291, 0.0
      %v300 = vadd.f32 %v298, %v299
      %301 = vst [vmem:[%s260] sm:$0xff] %v300
      %v302 = vld [vmem:[%s264] sm:$0xff]
      %v303 = vadd.f32 %v292, 0.0
      %v304 = vadd.f32 %v302, %v303
      %305 = vst [vmem:[%s264] sm:$0xff] %v304
      %p306 = scmp.lt.s32.totalorder %s20, 1
      %s307 = scalar_select %p306, %s20, 1
      %s308 = smul.addr %s307, 8
      %s309 = scalar_lea.vmem %s2, %s308
      %p310 = scmp.lt.s32.totalorder %s20, 1
      %s311 = scalar_select %p310, %s20, 1
      %s312 = smul.addr %s311, 8
      %s313 = scalar_lea.vmem %s3, %s312
      %p314 = scmp.lt.s32.totalorder %s20, 1
      %s315 = scalar_select %p314, %s20, 1
      %s316 = smul.addr %s315, 8
      %s317 = scalar_lea.vmem %s4, %s316
      // Predicated region
      $region33: #{soft_dice_loss.1} parent=27 // pred_check
        %p318 = pneg %p102
      $region34: #{soft_dice_loss.1} parent=27 // pred_check_branch
        %320 = sbr.rel (%p318) target = $region36
      $region35: #{soft_dice_loss.1} parent=27 // pred_region
        _
      $region36: #{soft_dice_loss.1} parent=27 // pred_fallthru
        _
      // Predicated region
      $region37: #{soft_dice_loss.1} parent=27 // pred_check
        %p321 = pneg %p128
      $region38: #{soft_dice_loss.1} parent=27 // pred_check_branch
        %323 = sbr.rel (%p321) target = $region40
      $region39: #{soft_dice_loss.1} parent=27 // pred_region
        _
      $region40: #{soft_dice_loss.1} parent=27 // pred_fallthru
        _
      // Predicated region
      $region41: #{soft_dice_loss.1} parent=27 // pred_check
        %p324 = pneg %p154
      $region42: #{soft_dice_loss.1} parent=27 // pred_check_branch
        %326 = sbr.rel (%p324) target = $region44
      $region43: #{soft_dice_loss.1} parent=27 // pred_region
        _
      $region44: #{soft_dice_loss.1} parent=27 // pred_fallthru
        _
    $region28: #{soft_dice_loss.1} parent=5 // pred_fallthru
      _
    %p327 = scmp.le.s32.totalorder 2, %s11
    // Predicated region
    $region45: #{soft_dice_loss.1} parent=5 // pred_check
      %p328 = pneg %p327
    $region46: #{soft_dice_loss.1} parent=5 // pred_check_branch
      %330 = sbr.rel (%p328) target = $region48
    $region47: #{soft_dice_loss.1} parent=5 // pred_region
      %s331 = ssub.s32 %s11, 2
      // Predicated region
      $region49: #{soft_dice_loss.1} parent=47 // pred_check
        %p332 = pneg %p108
      $region50: #{soft_dice_loss.1} parent=47 // pred_check_branch
        %334 = sbr.rel (%p332) target = $region52
      $region51: #{soft_dice_loss.1} parent=47 // pred_region
        %p335 = scmp.lt.s32.totalorder %s22, 1
        %s336 = scalar_select %p335, %s22, 1
        %s337 = smul.addr %s336, 8
        %s338 = scalar_lea.vmem %s2, %s337
      $region52: #{soft_dice_loss.1} parent=47 // pred_fallthru
        _
      // Predicated region
      $region53: #{soft_dice_loss.1} parent=47 // pred_check
        %p339 = pneg %p134
      $region54: #{soft_dice_loss.1} parent=47 // pred_check_branch
        %341 = sbr.rel (%p339) target = $region56
      $region55: #{soft_dice_loss.1} parent=47 // pred_region
        %p342 = scmp.lt.s32.totalorder %s22, 1
        %s343 = scalar_select %p342, %s22, 1
        %s344 = smul.addr %s343, 8
        %s345 = scalar_lea.vmem %s3, %s344
      $region56: #{soft_dice_loss.1} parent=47 // pred_fallthru
        _
      // Predicated region
      $region57: #{soft_dice_loss.1} parent=47 // pred_check
        %p346 = pneg %p160
      $region58: #{soft_dice_loss.1} parent=47 // pred_check_branch
        %348 = sbr.rel (%p346) target = $region60
      $region59: #{soft_dice_loss.1} parent=47 // pred_region
        %p349 = scmp.lt.s32.totalorder %s22, 1
        %s350 = scalar_select %p349, %s22, 1
        %s351 = smul.addr %s350, 8
        %s352 = scalar_lea.vmem %s4, %s351
      $region60: #{soft_dice_loss.1} parent=47 // pred_fallthru
        _
    $region48: #{soft_dice_loss.1} parent=5 // pred_fallthru
      _
  $region6: #{soft_dice_loss.1} parent=0 // loop_footer
    %s15 = sadd.s32 1, %s11
  $region7: #{soft_dice_loss.1} parent=0 // loop_footer_branch
    %10 = sbr.rel target = $region3
  $region8: #{soft_dice_loss.1} parent=0 // loop_exit
    _

</llo_original>
